<compile_context>
chip_gen: v7x
topology: tpu7x:2x2x1
jax: 0.10.0
libtpu: 0.0.40
codegen_flags: <defaults>
</compile_context>

<pallas_src>
import functools

import jax
import jax.numpy as jnp
from jax.experimental import pallas as pl
from jax.experimental.pallas import tpu as pltpu


def _spectral_mac_kernel(x_ref, w_ref, o_ref, *, B, Cin, Cout, modes1, sub):
    """Complex contraction over Cin for one block of frequency lanes.

    x_ref : (2*B*Cin,  TM) f32   row = plane*B*Cin  + b*Cin  + i   (plane 0=re, 1=im)
    w_ref : (2*Cin*Cout, TM) f32 row = plane*Cin*Cout + i*Cout + o
    o_ref : (2*B*Cout, TM) f32   row = plane*B*Cout + b*Cout + o
    Frequencies >= modes1 are written as zeros (out_ft zero-pad fused here).
    """
    tm = o_ref.shape[-1]
    blk_start = pl.program_id(0) * tm

    @pl.when(blk_start >= modes1)
    def _zero_tail():
        # Block lies entirely in the zero-padded tail of out_ft.
        o_ref[...] = jnp.zeros_like(o_ref)

    @pl.when(blk_start < modes1)
    def _compute():
        n_sub = tm // sub
        # 2-D lane iota for the modes1 boundary mask (per-lane, broadcast on rows).
        lane = jax.lax.broadcasted_iota(jnp.int32, (Cout, sub), 1)
        for c in range(n_sub):                      # static: lane sub-chunks
            ls = c * sub
            keep = (blk_start + ls + lane) < modes1
            for b in range(B):                      # static: small FNO batch/channels
                x_re0 = b * Cin
                x_im0 = B * Cin + b * Cin
                # Accumulators stay vreg-resident for the whole Cin loop.
                acc_re = jnp.zeros((Cout, sub), jnp.float32)
                acc_im = jnp.zeros((Cout, sub), jnp.float32)
                for i in range(Cin):                # static: unrolled channel MAC
                    # One explicit sublane broadcast per operand (reused for both
                    # products) instead of a broadcast_in_dim per use.
                    xr = jnp.broadcast_to(
                        x_ref[pl.ds(x_re0 + i, 1), pl.ds(ls, sub)], (Cout, sub))
                    xi = jnp.broadcast_to(
                        x_ref[pl.ds(x_im0 + i, 1), pl.ds(ls, sub)], (Cout, sub))
                    wr = w_ref[pl.ds(i * Cout, Cout), pl.ds(ls, sub)]
                    wi = w_ref[pl.ds(Cin * Cout + i * Cout, Cout), pl.ds(ls, sub)]
                    # Plain 4-mult complex MAC (no Gauss: fewer accumulators,
                    # better imag-part cancellation behaviour).
                    acc_re = acc_re + xr * wr - xi * wi
                    acc_im = acc_im + xr * wi + xi * wr
                # Mask lanes >= modes1 (straddling block) and store lane-dense.
                o_ref[pl.ds(b * Cout, Cout), pl.ds(ls, sub)] = (
                    jnp.where(keep, acc_re, 0.0))
                o_ref[pl.ds(B * Cout + b * Cout, Cout), pl.ds(ls, sub)] = (
                    jnp.where(keep, acc_im, 0.0))


def _vmem_limit_and_budget():
    """Scoped-VMEM request and live-block budget, per TPU generation."""
    try:
        cap = int(pltpu.get_tpu_info().vmem_capacity_bytes)
    except Exception:
        cap = 64 * 1024 * 1024          # assume the smallest current part (v7x/TC)
    limit = min(cap * 3 // 4, 96 * 1024 * 1024)   # 96 MiB on 128 MiB parts, 48 MiB on v7x
    budget = limit * 3 // 4                       # headroom for sems / compiler scratch
    return limit, budget


def _pick_mode_tile(n_freq, B, Cin, Cout, budget_bytes):
    """Lane-tile size over the frequency axis."""
    if n_freq < 128:
        return n_freq                    # full extent (legal block for all arrays)

    def pad8(r):                         # sublane padding of the fused leading dims
        return ((r + 7) // 8) * 8

    # Honest per-lane VMEM cost: x + w + out blocks, f32, double-buffered.
    rows = pad8(2 * B * Cin) + pad8(2 * Cin * Cout) + pad8(2 * B * Cout)
    bytes_per_lane = 4 * rows * 2
    tm = (budget_bytes // bytes_per_lane) // 128 * 128
    tm = max(tm, 128)
    # v7x megacore / pipelining: keep at least 2 mode blocks when there is work.
    if n_freq >= 256:
        tm = min(tm, max(128, (n_freq // 2) // 128 * 128))
    # Never larger than the whole (128-rounded) frequency axis.
    tm = min(tm, ((n_freq + 127) // 128) * 128)
    return tm


def spectral_mul_pallas(xf_packed, w_packed, *, B, Cin, Cout, modes1, n_freq):
    """out[plane*B*Cout + b*Cout + o, f] = (sum_i x[b,i,f] * w[i,o,f]) for f < modes1,
    0 for f >= modes1.  Inputs/outputs are fused real/imag f32 planes."""
    vmem_limit, budget = _vmem_limit_and_budget()
    tm = _pick_mode_tile(n_freq, B, Cin, Cout, budget)

    # Inner sub-chunk: keeps the (Cout, sub) accumulators vreg-resident.
    if tm % 128 != 0:
        sub = tm                                   # small full-extent case
    elif tm % 256 == 0 and Cout <= 32:
        sub = 256
    else:
        sub = 128

    # Small full-extent case: the weight block must equal the weight array's lane
    # extent, so zero-pad the (tiny) weight lanes up to tm.  (For tm % 128 == 0 the
    # block is legal as-is and partial edge blocks are handled by Pallas.)
    if tm % 128 != 0 and w_packed.shape[-1] != tm:
        w_packed = jnp.pad(w_packed, ((0, 0), (0, tm - w_packed.shape[-1])))

    grid = (pl.cdiv(n_freq, tm),)
    # Blocks past modes1 only write zeros; clamp their input block index so the
    # pipeline re-uses the last useful block instead of fetching dead data.
    last_blk = max(pl.cdiv(modes1, tm) - 1, 0)

    x_spec = pl.BlockSpec((2 * B * Cin, tm), lambda m: (0, jnp.minimum(m, last_blk)))
    w_spec = pl.BlockSpec((2 * Cin * Cout, tm), lambda m: (0, jnp.minimum(m, last_blk)))
    o_spec = pl.BlockSpec((2 * B * Cout, tm), lambda m: (0, m))

    kernel = functools.partial(_spectral_mac_kernel, B=B, Cin=Cin, Cout=Cout,
                               modes1=modes1, sub=sub)

    return pl.pallas_call(
        kernel,
        out_shape=jax.ShapeDtypeStruct((2 * B * Cout, n_freq), jnp.float32),
        grid_spec=pltpu.PrefetchScalarGridSpec(
            num_scalar_prefetch=0,
            grid=grid,
            in_specs=[x_spec, w_spec],
            out_specs=o_spec,
        ),
        compiler_params=pltpu.CompilerParams(
            dimension_semantics=("parallel",),
            vmem_limit_bytes=vmem_limit,
        ),
    )(xf_packed, w_packed)


class SpectralConv1dPallas:
    def __init__(self, in_channels, out_channels, modes1, key):
        self.in_channels = in_channels
        self.out_channels = out_channels
        self.modes1 = modes1
        scale = 1.0 / (in_channels * out_channels)
        k_re, k_im = jax.random.split(key)
        # torch.rand(..., dtype=cfloat) -> uniform [0,1) for real & imag parts.
        w_re = (scale * jax.random.uniform(
            k_re, (in_channels, out_channels, modes1), jnp.float32))
        w_im = (scale * jax.random.uniform(
            k_im, (in_channels, out_channels, modes1), jnp.float32))
        # Packed once at init in the exact layout the kernel consumes:
        # (2*Cin*Cout, modes1), row = plane*Cin*Cout + i*Cout + o.
        self.w_packed = jnp.stack([w_re, w_im], axis=0).reshape(
            2 * in_channels * out_channels, modes1)
        self.weights1 = (w_re + 1j * w_im).astype(jnp.complex64)  # reference only
        # NOTE: for large-channel FNO configs a bf16-input / MXU dot_general path
        # would be faster; the small-channel VPU path is kept here for accuracy.

    def __call__(self, x):
        # x: (B, C_in, N) float32
        B, Cin, N = x.shape
        assert Cin == self.in_channels
        n_freq = N // 2 + 1
        assert self.modes1 <= n_freq, "modes1 must be <= N//2 + 1"
        Cout = self.out_channels

        # TODO(synk): rfft/irfft have no Pallas TPU equivalent; done in plain JAX.
        x_ft = jnp.fft.rfft(x)                               # (B, Cin, n_freq) c64
        # One fused real/imag plane: (2*B*Cin, n_freq), row = plane*B*Cin + b*Cin + i.
        xf_packed = jnp.stack(
            [jnp.real(x_ft), jnp.imag(x_ft)], axis=0
        ).astype(jnp.float32).reshape(2 * B * Cin, n_freq)

        out2d = spectral_mul_pallas(
            xf_packed, self.w_packed,
            B=B, Cin=Cin, Cout=Cout, modes1=self.modes1, n_freq=n_freq)

        # Zero-padding beyond modes1 is already fused into the kernel output.
        out = out2d.reshape(2, B, Cout, n_freq)
        out_ft = jax.lax.complex(out[0], out[1])             # (B, Cout, n_freq) c64
        return jnp.fft.irfft(out_ft, n=N)                    # (B, Cout, N) f32


if __name__ == "__main__":
    key = jax.random.PRNGKey(0)
    k_w, k_x = jax.random.split(key)

    B, Cin, Cout, N, modes1 = 2, 4, 4, 16, 8
    layer = SpectralConv1dPallas(Cin, Cout, modes1, k_w)

    x = jax.random.normal(k_x, (B, Cin, N), jnp.float32)

    y = layer(x)
    jax.block_until_ready(y)

    # Reference: same math in pure JAX (mirrors the PyTorch module).
    x_ft = jnp.fft.rfft(x)
    ref_modes = jnp.einsum('bix,iox->box', x_ft[:, :, :modes1], layer.weights1)
    ref_ft = jnp.zeros((B, Cout, N // 2 + 1), jnp.complex64)
    ref_ft = ref_ft.at[:, :, :modes1].set(ref_modes)
    y_ref = jnp.fft.irfft(ref_ft, n=N)

    assert y.shape == (B, Cout, N)
    assert jnp.allclose(y, y_ref, atol=1e-5, rtol=1e-5)

    print("KERNEL_OK")
</pallas_src>

<mosaic_0001>
module attributes {stable_mosaic.version = 11 : i64} {
  func.func @_spectral_mac_kernel(%arg0: i32, %arg1: memref<16x9xf32, #tpu.memory_space<vmem>>, %arg2: memref<32x9xf32, #tpu.memory_space<vmem>>, %arg3: memref<16x9xf32, #tpu.memory_space<vmem>>) attributes {dimension_semantics = [#tpu.dimension_semantics<parallel>], iteration_bounds = array<i64: 1>, scalar_prefetch = 0 : i64, scratch_operands = 0 : i64, tpu.core_type = #tpu.core_type<tc>, window_params = [{transform_indices = @transform_0, window_bounds = array<i64: 16, 9>}, {transform_indices = @transform_1, window_bounds = array<i64: 32, 9>}, {transform_indices = @transform_2, window_bounds = array<i64: 16, 9>}]} {
    %c9_i32 = arith.constant 9 : i32
    %0 = arith.muli %arg0, %c9_i32 : i32
    %c8_i32 = arith.constant 8 : i32
    %1 = arith.cmpi sge, %0, %c8_i32 : i32
    %2 = arith.extui %1 : i1 to i32
    %c0_i32 = arith.constant 0 : i32
    %3 = arith.cmpi ne, %2, %c0_i32 : i32
    scf.if %3 {
      %cst = arith.constant 0.000000e+00 : f32
      %7 = vector.broadcast %cst : f32 to vector<16x9xf32>
      %c0 = arith.constant 0 : index
      %c0_2 = arith.constant 0 : index
      %8 = vector.load %arg3[%c0, %c0_2] : memref<16x9xf32, #tpu.memory_space<vmem>>, vector<16x9xf32>
      tpu.vector_store %arg3[%c0, %c0_2], %7 {strides = array<i32>} : memref<16x9xf32, #tpu.memory_space<vmem>>, vector<16x9xf32>,
    } else {
    }
    %c8_i32_0 = arith.constant 8 : i32
    %4 = arith.cmpi slt, %0, %c8_i32_0 : i32
    %5 = arith.extui %4 : i1 to i32
    %c0_i32_1 = arith.constant 0 : i32
    %6 = arith.cmpi ne, %5, %c0_i32_1 : i32
    scf.if %6 {
      %7 = tpu.iota {dimensions = array<i32: 1>} : vector<4x9xi32>
      %c0_i32_2 = arith.constant 0 : i32
      %8 = arith.addi %0, %c0_i32_2 : i32
      %9 = vector.broadcast %8 : i32 to vector<4x9xi32>
      %10 = arith.addi %9, %7 : vector<4x9xi32>
      %c8_i32_3 = arith.constant 8 : i32
      %11 = vector.broadcast %c8_i32_3 : i32 to vector<4x9xi32>
      %12 = arith.cmpi slt, %10, %11 : vector<4x9xi32>
      %cst = arith.constant 0.000000e+00 : f32
      %13 = vector.broadcast %cst : f32 to vector<4x9xf32>
      %cst_4 = arith.constant 0.000000e+00 : f32
      %14 = vector.broadcast %cst_4 : f32 to vector<4x9xf32>
      %c0 = arith.constant 0 : index
      %c0_5 = arith.constant 0 : index
      %15 = vector.load %arg1[%c0, %c0_5] : memref<16x9xf32, #tpu.memory_space<vmem>>, vector<1x9xf32>
      %16 = vector.shape_cast %15 : vector<1x9xf32> to vector<1x9xf32>
      %17 = vector.broadcast %16 : vector<1x9xf32> to vector<4x9xf32>
      %c8 = arith.constant 8 : index
      %c0_6 = arith.constant 0 : index
      %18 = vector.load %arg1[%c8, %c0_6] : memref<16x9xf32, #tpu.memory_space<vmem>>, vector<1x9xf32>
      %19 = vector.shape_cast %18 : vector<1x9xf32> to vector<1x9xf32>
      %20 = vector.broadcast %19 : vector<1x9xf32> to vector<4x9xf32>
      %c0_7 = arith.constant 0 : index
      %c0_8 = arith.constant 0 : index
      %21 = vector.load %arg2[%c0_7, %c0_8] : memref<32x9xf32, #tpu.memory_space<vmem>>, vector<4x9xf32>
      %c16 = arith.constant 16 : index
      %c0_9 = arith.constant 0 : index
      %22 = vector.load %arg2[%c16, %c0_9] : memref<32x9xf32, #tpu.memory_space<vmem>>, vector<4x9xf32>
      %23 = arith.mulf %17, %21 : vector<4x9xf32>
      %24 = arith.addf %13, %23 : vector<4x9xf32>
      %25 = arith.mulf %20, %22 : vector<4x9xf32>
      %26 = arith.subf %24, %25 : vector<4x9xf32>
      %27 = arith.mulf %17, %22 : vector<4x9xf32>
      %28 = arith.addf %14, %27 : vector<4x9xf32>
      %29 = arith.mulf %20, %21 : vector<4x9xf32>
      %30 = arith.addf %28, %29 : vector<4x9xf32>
      %c1 = arith.constant 1 : index
      %c0_10 = arith.constant 0 : index
      %31 = vector.load %arg1[%c1, %c0_10] : memref<16x9xf32, #tpu.memory_space<vmem>>, vector<1x9xf32>
      %32 = vector.shape_cast %31 : vector<1x9xf32> to vector<1x9xf32>
      %33 = vector.broadcast %32 : vector<1x9xf32> to vector<4x9xf32>
      %c9 = arith.constant 9 : index
      %c0_11 = arith.constant 0 : index
      %34 = vector.load %arg1[%c9, %c0_11] : memref<16x9xf32, #tpu.memory_space<vmem>>, vector<1x9xf32>
      %35 = vector.shape_cast %34 : vector<1x9xf32> to vector<1x9xf32>
      %36 = vector.broadcast %35 : vector<1x9xf32> to vector<4x9xf32>
      %c4 = arith.constant 4 : index
      %c0_12 = arith.constant 0 : index
      %37 = vector.load %arg2[%c4, %c0_12] : memref<32x9xf32, #tpu.memory_space<vmem>>, vector<4x9xf32>
      %c20 = arith.constant 20 : index
      %c0_13 = arith.constant 0 : index
      %38 = vector.load %arg2[%c20, %c0_13] : memref<32x9xf32, #tpu.memory_space<vmem>>, vector<4x9xf32>
      %39 = arith.mulf %33, %37 : vector<4x9xf32>
      %40 = arith.addf %26, %39 : vector<4x9xf32>
      %41 = arith.mulf %36, %38 : vector<4x9xf32>
      %42 = arith.subf %40, %41 : vector<4x9xf32>
      %43 = arith.mulf %33, %38 : vector<4x9xf32>
      %44 = arith.addf %30, %43 : vector<4x9xf32>
      %45 = arith.mulf %36, %37 : vector<4x9xf32>
      %46 = arith.addf %44, %45 : vector<4x9xf32>
      %c2 = arith.constant 2 : index
      %c0_14 = arith.constant 0 : index
      %47 = vector.load %arg1[%c2, %c0_14] : memref<16x9xf32, #tpu.memory_space<vmem>>, vector<1x9xf32>
      %48 = vector.shape_cast %47 : vector<1x9xf32> to vector<1x9xf32>
      %49 = vector.broadcast %48 : vector<1x9xf32> to vector<4x9xf32>
      %c10 = arith.constant 10 : index
      %c0_15 = arith.constant 0 : index
      %50 = vector.load %arg1[%c10, %c0_15] : memref<16x9xf32, #tpu.memory_space<vmem>>, vector<1x9xf32>
      %51 = vector.shape_cast %50 : vector<1x9xf32> to vector<1x9xf32>
      %52 = vector.broadcast %51 : vector<1x9xf32> to vector<4x9xf32>
      %c8_16 = arith.constant 8 : index
      %c0_17 = arith.constant 0 : index
      %53 = vector.load %arg2[%c8_16, %c0_17] : memref<32x9xf32, #tpu.memory_space<vmem>>, vector<4x9xf32>
      %c24 = arith.constant 24 : index
      %c0_18 = arith.constant 0 : index
      %54 = vector.load %arg2[%c24, %c0_18] : memref<32x9xf32, #tpu.memory_space<vmem>>, vector<4x9xf32>
      %55 = arith.mulf %49, %53 : vector<4x9xf32>
      %56 = arith.addf %42, %55 : vector<4x9xf32>
      %57 = arith.mulf %52, %54 : vector<4x9xf32>
      %58 = arith.subf %56, %57 : vector<4x9xf32>
      %59 = arith.mulf %49, %54 : vector<4x9xf32>
      %60 = arith.addf %46, %59 : vector<4x9xf32>
      %61 = arith.mulf %52, %53 : vector<4x9xf32>
      %62 = arith.addf %60, %61 : vector<4x9xf32>
      %c3 = arith.constant 3 : index
      %c0_19 = arith.constant 0 : index
      %63 = vector.load %arg1[%c3, %c0_19] : memref<16x9xf32, #tpu.memory_space<vmem>>, vector<1x9xf32>
      %64 = vector.shape_cast %63 : vector<1x9xf32> to vector<1x9xf32>
      %65 = vector.broadcast %64 : vector<1x9xf32> to vector<4x9xf32>
      %c11 = arith.constant 11 : index
      %c0_20 = arith.constant 0 : index
      %66 = vector.load %arg1[%c11, %c0_20] : memref<16x9xf32, #tpu.memory_space<vmem>>, vector<1x9xf32>
      %67 = vector.shape_cast %66 : vector<1x9xf32> to vector<1x9xf32>
      %68 = vector.broadcast %67 : vector<1x9xf32> to vector<4x9xf32>
      %c12 = arith.constant 12 : index
      %c0_21 = arith.constant 0 : index
      %69 = vector.load %arg2[%c12, %c0_21] : memref<32x9xf32, #tpu.memory_space<vmem>>, vector<4x9xf32>
      %c28 = arith.constant 28 : index
      %c0_22 = arith.constant 0 : index
      %70 = vector.load %arg2[%c28, %c0_22] : memref<32x9xf32, #tpu.memory_space<vmem>>, vector<4x9xf32>
      %71 = arith.mulf %65, %69 : vector<4x9xf32>
      %72 = arith.addf %58, %71 : vector<4x9xf32>
      %73 = arith.mulf %68, %70 : vector<4x9xf32>
      %74 = arith.subf %72, %73 : vector<4x9xf32>
      %75 = arith.mulf %65, %70 : vector<4x9xf32>
      %76 = arith.addf %62, %75 : vector<4x9xf32>
      %77 = arith.mulf %68, %69 : vector<4x9xf32>
      %78 = arith.addf %76, %77 : vector<4x9xf32>
      %cst_23 = arith.constant 0.000000e+00 : f32
      %79 = vector.broadcast %cst_23 : f32 to vector<4x9xf32>
      %80 = arith.select %12, %74, %79 : vector<4x9xi1>, vector<4x9xf32>
      %c0_24 = arith.constant 0 : index
      %c0_25 = arith.constant 0 : index
      %81 = vector.load %arg3[%c0_24, %c0_25] : memref<16x9xf32, #tpu.memory_space<vmem>>, vector<4x9xf32>
      tpu.vector_store %arg3[%c0_24, %c0_25], %80 {strides = array<i32>} : memref<16x9xf32, #tpu.memory_space<vmem>>, vector<4x9xf32>,
      %cst_26 = arith.constant 0.000000e+00 : f32
      %82 = vector.broadcast %cst_26 : f32 to vector<4x9xf32>
      %83 = arith.select %12, %78, %82 : vector<4x9xi1>, vector<4x9xf32>
      %c8_27 = arith.constant 8 : index
      %c0_28 = arith.constant 0 : index
      %84 = vector.load %arg3[%c8_27, %c0_28] : memref<16x9xf32, #tpu.memory_space<vmem>>, vector<4x9xf32>
      tpu.vector_store %arg3[%c8_27, %c0_28], %83 {strides = array<i32>} : memref<16x9xf32, #tpu.memory_space<vmem>>, vector<4x9xf32>,
      %cst_29 = arith.constant 0.000000e+00 : f32
      %85 = vector.broadcast %cst_29 : f32 to vector<4x9xf32>
      %cst_30 = arith.constant 0.000000e+00 : f32
      %86 = vector.broadcast %cst_30 : f32 to vector<4x9xf32>
      %c4_31 = arith.constant 4 : index
      %c0_32 = arith.constant 0 : index
      %87 = vector.load %arg1[%c4_31, %c0_32] : memref<16x9xf32, #tpu.memory_space<vmem>>, vector<1x9xf32>
      %88 = vector.shape_cast %87 : vector<1x9xf32> to vector<1x9xf32>
      %89 = vector.broadcast %88 : vector<1x9xf32> to vector<4x9xf32>
      %c12_33 = arith.constant 12 : index
      %c0_34 = arith.constant 0 : index
      %90 = vector.load %arg1[%c12_33, %c0_34] : memref<16x9xf32, #tpu.memory_space<vmem>>, vector<1x9xf32>
      %91 = vector.shape_cast %90 : vector<1x9xf32> to vector<1x9xf32>
      %92 = vector.broadcast %91 : vector<1x9xf32> to vector<4x9xf32>
      %c0_35 = arith.constant 0 : index
      %c0_36 = arith.constant 0 : index
      %93 = vector.load %arg2[%c0_35, %c0_36] : memref<32x9xf32, #tpu.memory_space<vmem>>, vector<4x9xf32>
      %c16_37 = arith.constant 16 : index
      %c0_38 = arith.constant 0 : index
      %94 = vector.load %arg2[%c16_37, %c0_38] : memref<32x9xf32, #tpu.memory_space<vmem>>, vector<4x9xf32>
      %95 = arith.mulf %89, %93 : vector<4x9xf32>
      %96 = arith.addf %85, %95 : vector<4x9xf32>
      %97 = arith.mulf %92, %94 : vector<4x9xf32>
      %98 = arith.subf %96, %97 : vector<4x9xf32>
      %99 = arith.mulf %89, %94 : vector<4x9xf32>
      %100 = arith.addf %86, %99 : vector<4x9xf32>
      %101 = arith.mulf %92, %93 : vector<4x9xf32>
      %102 = arith.addf %100, %101 : vector<4x9xf32>
      %c5 = arith.constant 5 : index
      %c0_39 = arith.constant 0 : index
      %103 = vector.load %arg1[%c5, %c0_39] : memref<16x9xf32, #tpu.memory_space<vmem>>, vector<1x9xf32>
      %104 = vector.shape_cast %103 : vector<1x9xf32> to vector<1x9xf32>
      %105 = vector.broadcast %104 : vector<1x9xf32> to vector<4x9xf32>
      %c13 = arith.constant 13 : index
      %c0_40 = arith.constant 0 : index
      %106 = vector.load %arg1[%c13, %c0_40] : memref<16x9xf32, #tpu.memory_space<vmem>>, vector<1x9xf32>
      %107 = vector.shape_cast %106 : vector<1x9xf32> to vector<1x9xf32>
      %108 = vector.broadcast %107 : vector<1x9xf32> to vector<4x9xf32>
      %c4_41 = arith.constant 4 : index
      %c0_42 = arith.constant 0 : index
      %109 = vector.load %arg2[%c4_41, %c0_42] : memref<32x9xf32, #tpu.memory_space<vmem>>, vector<4x9xf32>
      %c20_43 = arith.constant 20 : index
      %c0_44 = arith.constant 0 : index
      %110 = vector.load %arg2[%c20_43, %c0_44] : memref<32x9xf32, #tpu.memory_space<vmem>>, vector<4x9xf32>
      %111 = arith.mulf %105, %109 : vector<4x9xf32>
      %112 = arith.addf %98, %111 : vector<4x9xf32>
      %113 = arith.mulf %108, %110 : vector<4x9xf32>
      %114 = arith.subf %112, %113 : vector<4x9xf32>
      %115 = arith.mulf %105, %110 : vector<4x9xf32>
      %116 = arith.addf %102, %115 : vector<4x9xf32>
      %117 = arith.mulf %108, %109 : vector<4x9xf32>
      %118 = arith.addf %116, %117 : vector<4x9xf32>
      %c6 = arith.constant 6 : index
      %c0_45 = arith.constant 0 : index
      %119 = vector.load %arg1[%c6, %c0_45] : memref<16x9xf32, #tpu.memory_space<vmem>>, vector<1x9xf32>
      %120 = vector.shape_cast %119 : vector<1x9xf32> to vector<1x9xf32>
      %121 = vector.broadcast %120 : vector<1x9xf32> to vector<4x9xf32>
      %c14 = arith.constant 14 : index
      %c0_46 = arith.constant 0 : index
      %122 = vector.load %arg1[%c14, %c0_46] : memref<16x9xf32, #tpu.memory_space<vmem>>, vector<1x9xf32>
      %123 = vector.shape_cast %122 : vector<1x9xf32> to vector<1x9xf32>
      %124 = vector.broadcast %123 : vector<1x9xf32> to vector<4x9xf32>
      %c8_47 = arith.constant 8 : index
      %c0_48 = arith.constant 0 : index
      %125 = vector.load %arg2[%c8_47, %c0_48] : memref<32x9xf32, #tpu.memory_space<vmem>>, vector<4x9xf32>
      %c24_49 = arith.constant 24 : index
      %c0_50 = arith.constant 0 : index
      %126 = vector.load %arg2[%c24_49, %c0_50] : memref<32x9xf32, #tpu.memory_space<vmem>>, vector<4x9xf32>
      %127 = arith.mulf %121, %125 : vector<4x9xf32>
      %128 = arith.addf %114, %127 : vector<4x9xf32>
      %129 = arith.mulf %124, %126 : vector<4x9xf32>
      %130 = arith.subf %128, %129 : vector<4x9xf32>
      %131 = arith.mulf %121, %126 : vector<4x9xf32>
      %132 = arith.addf %118, %131 : vector<4x9xf32>
      %133 = arith.mulf %124, %125 : vector<4x9xf32>
      %134 = arith.addf %132, %133 : vector<4x9xf32>
      %c7 = arith.constant 7 : index
      %c0_51 = arith.constant 0 : index
      %135 = vector.load %arg1[%c7, %c0_51] : memref<16x9xf32, #tpu.memory_space<vmem>>, vector<1x9xf32>
      %136 = vector.shape_cast %135 : vector<1x9xf32> to vector<1x9xf32>
      %137 = vector.broadcast %136 : vector<1x9xf32> to vector<4x9xf32>
      %c15 = arith.constant 15 : index
      %c0_52 = arith.constant 0 : index
      %138 = vector.load %arg1[%c15, %c0_52] : memref<16x9xf32, #tpu.memory_space<vmem>>, vector<1x9xf32>
      %139 = vector.shape_cast %138 : vector<1x9xf32> to vector<1x9xf32>
      %140 = vector.broadcast %139 : vector<1x9xf32> to vector<4x9xf32>
      %c12_53 = arith.constant 12 : index
      %c0_54 = arith.constant 0 : index
      %141 = vector.load %arg2[%c12_53, %c0_54] : memref<32x9xf32, #tpu.memory_space<vmem>>, vector<4x9xf32>
      %c28_55 = arith.constant 28 : index
      %c0_56 = arith.constant 0 : index
      %142 = vector.load %arg2[%c28_55, %c0_56] : memref<32x9xf32, #tpu.memory_space<vmem>>, vector<4x9xf32>
      %143 = arith.mulf %137, %141 : vector<4x9xf32>
      %144 = arith.addf %130, %143 : vector<4x9xf32>
      %145 = arith.mulf %140, %142 : vector<4x9xf32>
      %146 = arith.subf %144, %145 : vector<4x9xf32>
      %147 = arith.mulf %137, %142 : vector<4x9xf32>
      %148 = arith.addf %134, %147 : vector<4x9xf32>
      %149 = arith.mulf %140, %141 : vector<4x9xf32>
      %150 = arith.addf %148, %149 : vector<4x9xf32>
      %cst_57 = arith.constant 0.000000e+00 : f32
      %151 = vector.broadcast %cst_57 : f32 to vector<4x9xf32>
      %152 = arith.select %12, %146, %151 : vector<4x9xi1>, vector<4x9xf32>
      %c4_58 = arith.constant 4 : index
      %c0_59 = arith.constant 0 : index
      %153 = vector.load %arg3[%c4_58, %c0_59] : memref<16x9xf32, #tpu.memory_space<vmem>>, vector<4x9xf32>
      tpu.vector_store %arg3[%c4_58, %c0_59], %152 {strides = array<i32>} : memref<16x9xf32, #tpu.memory_space<vmem>>, vector<4x9xf32>,
      %cst_60 = arith.constant 0.000000e+00 : f32
      %154 = vector.broadcast %cst_60 : f32 to vector<4x9xf32>
      %155 = arith.select %12, %150, %154 : vector<4x9xi1>, vector<4x9xf32>
      %c12_61 = arith.constant 12 : index
      %c0_62 = arith.constant 0 : index
      %156 = vector.load %arg3[%c12_61, %c0_62] : memref<16x9xf32, #tpu.memory_space<vmem>>, vector<4x9xf32>
      tpu.vector_store %arg3[%c12_61, %c0_62], %155 {strides = array<i32>} : memref<16x9xf32, #tpu.memory_space<vmem>>, vector<4x9xf32>,
    } else {
    }
    return
  }
  func.func @transform_0(%arg0: i32) -> (i32, i32) {
    %c0_i32 = arith.constant 0 : i32
    %0 = arith.minsi %arg0, %c0_i32 : i32
    %c0_i32_0 = arith.constant 0 : i32
    %c0_i32_1 = arith.constant 0 : i32
    return %c0_i32_0, %0 : i32, i32
  }
  func.func @transform_1(%arg0: i32) -> (i32, i32) {
    %c0_i32 = arith.constant 0 : i32
    %0 = arith.minsi %arg0, %c0_i32 : i32
    %c0_i32_0 = arith.constant 0 : i32
    %c0_i32_1 = arith.constant 0 : i32
    return %c0_i32_0, %0 : i32, i32
  }
  func.func @transform_2(%arg0: i32) -> (i32, i32) {
    %c0_i32 = arith.constant 0 : i32
    %c0_i32_0 = arith.constant 0 : i32
    return %c0_i32, %arg0 : i32, i32
  }
}

</mosaic_0001>

<llo_original>
// kernel: tpu_custom_call.1
$region0: #{tpu_custom_call.1}
  #allocation0 [shape = 'u32[]', space=smem, size = 0x4, offset = 0x4, fixed_abs, tag = 'smem constant byte address 0x4 - core index']
  #allocation1 [shape = 'u32[144,128]{1,0:T(1,128)}', space=vmem, size = 0x12000, scoped, tag = 'internal scratch']
  %s0 = inlined_call_operand.vmem [shape: f32[16,9], index: 0, kind: input, shape index: {}]
  %s1 = inlined_call_operand.vmem [shape: f32[32,9], index: 1, kind: input, shape index: {}]
  %s2 = inlined_call_operand.hbm [shape: f32[16,9], index: 2, kind: output, shape index: {}]
  %s3 = sld [smem:[#allocation0]]
  $region26: #{tpu_custom_call.1} parent=0
    _
  %s5 = ssub.s32 1, %s3
  %s6 = scalar_select 0, %s5, %s3
  $region1: #{tpu_custom_call.1} parent=0
    #allocation2 [shape = 'u8[8192]{0}', space=vmem, size = 0x2000, scoped, tag = 'output window, operand 0, single buffered']
    #allocation3 [shape = 's32[1]{0}', space=sflag, size = 0x4, scoped, tag = 'scoped memory for tpu_custom_call.1']
    %7 = vsyncpa [#allocation3], 0
    // Predicated region
    $region2: #{tpu_custom_call.1} parent=1 // pred_check
      _
    $region3: #{tpu_custom_call.1} parent=1 // pred_check_branch
      %9 = sbr.rel (0) target = $region5
    $region4: #{tpu_custom_call.1} parent=1 // pred_region
      _
    $region5: #{tpu_custom_call.1} parent=1 // pred_fallthru
      _
    // Predicated region
    $region6: #{tpu_custom_call.1} parent=1 // pred_check
      _
    $region7: #{tpu_custom_call.1} parent=1 // pred_check_branch
      %11 = sbr.rel (0) target = $region9
    $region8: #{tpu_custom_call.1} parent=1 // pred_region
      _
    $region9: #{tpu_custom_call.1} parent=1 // pred_fallthru
      _
    %s12 = smul.u32 0, 9
    %p13 = scmp.ge.s32.totalorder %s12, 8
    // Predicated region
    $region10: #{tpu_custom_call.1} parent=1 // pred_check
      %p14 = pneg %p13
    $region11: #{tpu_custom_call.1} parent=1 // pred_check_branch
      %16 = sbr.rel (%p14) target = $region13
    $region12: #{tpu_custom_call.1} parent=1 // pred_region
      %vm17 = vcmask 72704
      %18 = vst.msk [vmem:[#allocation2] sm:$0xff] %vm17, 0.0
      %19 = vst.msk [vmem:[#allocation2 + $0x8] sm:$0xff] %vm17, 0.0
    $region13: #{tpu_custom_call.1} parent=1 // pred_fallthru
      _
    %p20 = scmp.lt.s32.totalorder %s12, 8
    // Predicated region
    $region14: #{tpu_custom_call.1} parent=1 // pred_check
      %p21 = pneg %p20
    $region15: #{tpu_custom_call.1} parent=1 // pred_check_branch
      %23 = sbr.rel (%p21) target = $region17
    $region16: #{tpu_custom_call.1} parent=1 // pred_region
      %v24 = vlaneseq
      %v25 = vand.u32 %v24, 127
      %v26 = vstv %s12
      %v27 = vadd.s32 %v26, %v25
      %vm28 = vcmp.lt.s32.totalorder %v27, 8
      %v29 = vld [vmem:[%s0] sm:$0x1]
      %v30 = vlaneseq
      %v31 = vshrl.u32 %v30, 7
      %v32 = vsub.s32 0, %v31
      %v33 = vrot.slane %v29, %v32
      %v34 = vld [vmem:[%s0 + $0x8] sm:$0x1]
      %v35 = vlaneseq
      %v36 = vshrl.u32 %v35, 7
      %v37 = vsub.s32 0, %v36
      %v38 = vrot.slane %v34, %v37
      %v39 = vld [vmem:[%s1] sm:$0xf]
      %v40 = vld [vmem:[%s1 + $0x10] sm:$0xf]
      %v41 = vmul.f32 %v33, %v39
      %v42 = vadd.f32 %v41, 0.0
      %v43 = vmul.f32 %v38, %v40
      %v44 = vsub.f32 %v42, %v43
      %v45 = vmul.f32 %v33, %v40
      %v46 = vadd.f32 %v45, 0.0
      %v47 = vmul.f32 %v38, %v39
      %v48 = vadd.f32 %v46, %v47
      %v49 = vld [vmem:[%s0 + $0x1] sm:$0x1]
      %v50 = vlaneseq
      %v51 = vshrl.u32 %v50, 7
      %v52 = vsub.s32 0, %v51
      %v53 = vrot.slane %v49, %v52
      %v54 = vld [vmem:[%s0 + $0x9] sm:$0x1]
      %v55 = vlaneseq
      %v56 = vshrl.u32 %v55, 7
      %v57 = vsub.s32 0, %v56
      %v58 = vrot.slane %v54, %v57
      %v59 = vld [vmem:[%s1 + $0x4] sm:$0xf]
      %v60 = vld [vmem:[%s1 + $0x14] sm:$0xf]
      %v61 = vmul.f32 %v53, %v59
      %v62 = vadd.f32 %v44, %v61
      %v63 = vmul.f32 %v58, %v60
      %v64 = vsub.f32 %v62, %v63
      %v65 = vmul.f32 %v53, %v60
      %v66 = vadd.f32 %v48, %v65
      %v67 = vmul.f32 %v58, %v59
      %v68 = vadd.f32 %v66, %v67
      %v69 = vld [vmem:[%s0 + $0x2] sm:$0x1]
      %v70 = vlaneseq
      %v71 = vshrl.u32 %v70, 7
      %v72 = vsub.s32 0, %v71
      %v73 = vrot.slane %v69, %v72
      %v74 = vld [vmem:[%s0 + $0xa] sm:$0x1]
      %v75 = vlaneseq
      %v76 = vshrl.u32 %v75, 7
      %v77 = vsub.s32 0, %v76
      %v78 = vrot.slane %v74, %v77
      %v79 = vld [vmem:[%s1 + $0x8] sm:$0xf]
      %v80 = vld [vmem:[%s1 + $0x18] sm:$0xf]
      %v81 = vmul.f32 %v73, %v79
      %v82 = vadd.f32 %v64, %v81
      %v83 = vmul.f32 %v78, %v80
      %v84 = vsub.f32 %v82, %v83
      %v85 = vmul.f32 %v73, %v80
      %v86 = vadd.f32 %v68, %v85
      %v87 = vmul.f32 %v78, %v79
      %v88 = vadd.f32 %v86, %v87
      %v89 = vld [vmem:[%s0 + $0x3] sm:$0x1]
      %v90 = vlaneseq
      %v91 = vshrl.u32 %v90, 7
      %v92 = vsub.s32 0, %v91
      %v93 = vrot.slane %v89, %v92
      %v94 = vld [vmem:[%s0 + $0xb] sm:$0x1]
      %v95 = vlaneseq
      %v96 = vshrl.u32 %v95, 7
      %v97 = vsub.s32 0, %v96
      %v98 = vrot.slane %v94, %v97
      %v99 = vld [vmem:[%s1 + $0xc] sm:$0xf]
      %v100 = vld [vmem:[%s1 + $0x1c] sm:$0xf]
      %v101 = vmul.f32 %v93, %v99
      %v102 = vadd.f32 %v84, %v101
      %v103 = vmul.f32 %v98, %v100
      %v104 = vsub.f32 %v102, %v103
      %v105 = vmul.f32 %v93, %v100
      %v106 = vadd.f32 %v88, %v105
      %v107 = vmul.f32 %v98, %v99
      %v108 = vadd.f32 %v106, %v107
      %v109 = vsel %vm28, %v104, 0.0
      %vm110 = vcmask 68608
      %111 = vst.msk [vmem:[#allocation2] sm:$0xf] %vm110, %v109
      %v112 = vsel %vm28, %v108, 0.0
      %113 = vst.msk [vmem:[#allocation2 + $0x8] sm:$0xf] %vm110, %v112
      %v114 = vld [vmem:[%s0 + $0x4] sm:$0x1]
      %v115 = vlaneseq
      %v116 = vshrl.u32 %v115, 7
      %v117 = vsub.s32 0, %v116
      %v118 = vrot.slane %v114, %v117
      %v119 = vld [vmem:[%s0 + $0xc] sm:$0x1]
      %v120 = vlaneseq
      %v121 = vshrl.u32 %v120, 7
      %v122 = vsub.s32 0, %v121
      %v123 = vrot.slane %v119, %v122
      %v124 = vld [vmem:[%s1] sm:$0xf]
      %v125 = vld [vmem:[%s1 + $0x10] sm:$0xf]
      %v126 = vmul.f32 %v118, %v124
      %v127 = vadd.f32 %v126, 0.0
      %v128 = vmul.f32 %v123, %v125
      %v129 = vsub.f32 %v127, %v128
      %v130 = vmul.f32 %v118, %v125
      %v131 = vadd.f32 %v130, 0.0
      %v132 = vmul.f32 %v123, %v124
      %v133 = vadd.f32 %v131, %v132
      %v134 = vld [vmem:[%s0 + $0x5] sm:$0x1]
      %v135 = vlaneseq
      %v136 = vshrl.u32 %v135, 7
      %v137 = vsub.s32 0, %v136
      %v138 = vrot.slane %v134, %v137
      %v139 = vld [vmem:[%s0 + $0xd] sm:$0x1]
      %v140 = vlaneseq
      %v141 = vshrl.u32 %v140, 7
      %v142 = vsub.s32 0, %v141
      %v143 = vrot.slane %v139, %v142
      %v144 = vld [vmem:[%s1 + $0x4] sm:$0xf]
      %v145 = vld [vmem:[%s1 + $0x14] sm:$0xf]
      %v146 = vmul.f32 %v138, %v144
      %v147 = vadd.f32 %v129, %v146
      %v148 = vmul.f32 %v143, %v145
      %v149 = vsub.f32 %v147, %v148
      %v150 = vmul.f32 %v138, %v145
      %v151 = vadd.f32 %v133, %v150
      %v152 = vmul.f32 %v143, %v144
      %v153 = vadd.f32 %v151, %v152
      %v154 = vld [vmem:[%s0 + $0x6] sm:$0x1]
      %v155 = vlaneseq
      %v156 = vshrl.u32 %v155, 7
      %v157 = vsub.s32 0, %v156
      %v158 = vrot.slane %v154, %v157
      %v159 = vld [vmem:[%s0 + $0xe] sm:$0x1]
      %v160 = vlaneseq
      %v161 = vshrl.u32 %v160, 7
      %v162 = vsub.s32 0, %v161
      %v163 = vrot.slane %v159, %v162
      %v164 = vld [vmem:[%s1 + $0x8] sm:$0xf]
      %v165 = vld [vmem:[%s1 + $0x18] sm:$0xf]
      %v166 = vmul.f32 %v158, %v164
      %v167 = vadd.f32 %v149, %v166
      %v168 = vmul.f32 %v163, %v165
      %v169 = vsub.f32 %v167, %v168
      %v170 = vmul.f32 %v158, %v165
      %v171 = vadd.f32 %v153, %v170
      %v172 = vmul.f32 %v163, %v164
      %v173 = vadd.f32 %v171, %v172
      %v174 = vld [vmem:[%s0 + $0x7] sm:$0x1]
      %v175 = vlaneseq
      %v176 = vshrl.u32 %v175, 7
      %v177 = vsub.s32 0, %v176
      %v178 = vrot.slane %v174, %v177
      %v179 = vld [vmem:[%s0 + $0xf] sm:$0x1]
      %v180 = vlaneseq
      %v181 = vshrl.u32 %v180, 7
      %v182 = vsub.s32 0, %v181
      %v183 = vrot.slane %v179, %v182
      %v184 = vld [vmem:[%s1 + $0xc] sm:$0xf]
      %v185 = vld [vmem:[%s1 + $0x1c] sm:$0xf]
      %v186 = vmul.f32 %v178, %v184
      %v187 = vadd.f32 %v169, %v186
      %v188 = vmul.f32 %v183, %v185
      %v189 = vsub.f32 %v187, %v188
      %v190 = vmul.f32 %v178, %v185
      %v191 = vadd.f32 %v173, %v190
      %v192 = vmul.f32 %v183, %v184
      %v193 = vadd.f32 %v191, %v192
      %v194 = vsel %vm28, %v189, 0.0
      %195 = vst.msk [vmem:[#allocation2 + $0x4] sm:$0xf] %vm110, %v194
      %v196 = vsel %vm28, %v193, 0.0
      %197 = vst.msk [vmem:[#allocation2 + $0xc] sm:$0xf] %vm110, %v196
    $region17: #{tpu_custom_call.1} parent=1 // pred_fallthru
      _
    // Predicated region
    $region18: #{tpu_custom_call.1} parent=1 // pred_check
      _
    $region19: #{tpu_custom_call.1} parent=1 // pred_check_branch
      %199 = sbr.rel (0) target = $region21
    $region20: #{tpu_custom_call.1} parent=1 // pred_region
      %s201 = ssub.s32 256, 256
      %202 = vsyncadd [#allocation3], %s201
      %s203 = sshll.u32 [#allocation2], 4
      %s204 = int_to_ptr.vmem [resolvable:$true] %s203
      %209 = dma.vmem_to_hbm [thread:$0]  %s204, 256, %s2, [#allocation3], 128, 128, 8
    $region21: #{tpu_custom_call.1} parent=1 // pred_fallthru
      _
    // Predicated region
    $region22: #{tpu_custom_call.1} parent=1 // pred_check
      _
    $region23: #{tpu_custom_call.1} parent=1 // pred_check_branch
      %211 = sbr.rel (0) target = $region25
    $region24: #{tpu_custom_call.1} parent=1 // pred_region
      %212 = dma.done [#allocation3], 256
    $region25: #{tpu_custom_call.1} parent=1 // pred_fallthru
      _
    %213 = vsyncpa [#allocation3], 1

</llo_original>
